<compile_context>
chip_gen: v5e
topology: v5e:2x2
jax: 0.10.0
libtpu: 0.0.40
codegen_flags: <defaults>
</compile_context>

<pallas_src>
import functools

import jax
import jax.numpy as jnp
from jax.experimental import pallas as pl
from jax.experimental.pallas import tpu as pltpu


# ---------------------------------------------------------------------------
# Kernels
# ---------------------------------------------------------------------------

def _rms_fused_kernel(x_ref, scale_ref, o_ref, *, inv_n):
    """One batch element per grid step: reduce + normalize in a single pass."""
    # f32 only for the reduction (accuracy); elementwise pass stays in x.dtype.
    xf = x_ref[...].astype(jnp.float32)
    inv = jax.lax.rsqrt(jnp.sum(xf * xf) * inv_n)   # scalar 1/rms
    x = x_ref[...]                                  # native dtype
    scale = scale_ref[...]                          # native dtype (matches x)
    o_ref[...] = (x * scale[None, :, :]) * inv.astype(x.dtype)


def _rms_reduce_kernel(x_ref, stat_ref, *, inv_n):
    """Pass 1 (tiled path): accumulate the per-batch sum of squares over S tiles.

    stat_ref is a (1, 8, 128) f32 tile (one aligned vreg per batch element);
    every element holds the same value, keeping the layout (8,128)-aligned.
    At the last S tile it is converted in place to 1/rms.
    """
    s = pl.program_id(1)

    @pl.when(s == 0)
    def _init():
        stat_ref[...] = jnp.zeros_like(stat_ref)

    xf = x_ref[...].astype(jnp.float32)
    stat_ref[...] = stat_ref[...] + jnp.sum(xf * xf)

    @pl.when(s == pl.num_programs(1) - 1)
    def _finalize():
        stat_ref[...] = jax.lax.rsqrt(stat_ref[...] * inv_n)


def _rms_normalize_kernel(stat_ref, x_ref, scale_ref, o_ref):
    """Pass 2 (tiled path): stream S tiles, multiply by scale and 1/rms."""
    # All elements of the stat tile are identical; reduce to a scalar (XLU).
    inv = jnp.max(stat_ref[...])
    x = x_ref[...]
    scale = scale_ref[...]
    o_ref[...] = (x * scale[None, :, :]) * inv.astype(x.dtype)


# ---------------------------------------------------------------------------
# Wrapper
# ---------------------------------------------------------------------------

def _vmem_capacity_bytes():
    try:
        return int(pltpu.get_tpu_info().vmem_capacity_bytes)
    except Exception:
        return 64 << 20   # conservative: v7x per-TensorCore VMEM


def _pick_block_rows(S, D, itemsize, target_bytes=1 << 20):
    """Largest multiple-of-8 divisor of S whose (ts, D) tile is <= ~1 MiB."""
    best = None
    for ts in range(8, S + 1, 8):
        if S % ts == 0 and ts * D * itemsize <= target_bytes:
            best = ts
    if best is None and S % 8 == 0:
        best = 8          # cannot hit the target; smallest legal tile
    return best


def rmsnorm(x, scale, *, block_rows=None):
    """x: (B, S, D); scale: (layer_S, D) with layer_S >= S (PyTorch parameter)."""
    B, S, D = x.shape
    scale_s = scale[:S, :].astype(x.dtype)   # matches `self.scale[:x.shape[1], :]`
    itemsize = jnp.dtype(x.dtype).itemsize
    inv_n = 1.0 / float(S * D)               # == 1 / x[0].numel()

    vmem_budget = _vmem_capacity_bytes() - (8 << 20)
    # Fused-path live VMEM estimate: 2x in + 2x out + 2x scale (double-buffered
    # blocks) + an f32 temporary of the block for the reduction, + slack.
    blk_bytes = S * D * itemsize
    fused_need = 6 * blk_bytes + S * D * 4 + (2 << 20)

    ts = None
    if block_rows is not None:
        ts = int(block_rows)
    elif fused_need > vmem_budget or (B == 1 and S % 8 == 0 and S > 8):
        # Tile over S: either the per-batch slice does not fit the VMEM budget
        # (e.g. v7x's 64 MiB), or B == 1 and we want a second grid axis so both
        # v7x TensorCores get work.
        ts = _pick_block_rows(S, D, itemsize)

    if ts is None:
        # ---------------- fused single-pass path ----------------
        vmem_limit = int(min(vmem_budget, max(32 << 20, fused_need)))
        return pl.pallas_call(
            functools.partial(_rms_fused_kernel, inv_n=inv_n),
            out_shape=jax.ShapeDtypeStruct((B, S, D), x.dtype),
            grid_spec=pltpu.PrefetchScalarGridSpec(
                num_scalar_prefetch=0,
                grid=(B,),
                in_specs=[
                    pl.BlockSpec((1, S, D), lambda b: (b, 0, 0)),
                    pl.BlockSpec((S, D), lambda b: (0, 0)),
                ],
                out_specs=pl.BlockSpec((1, S, D), lambda b: (b, 0, 0)),
            ),
            compiler_params=pltpu.CompilerParams(
                dimension_semantics=("parallel",),
                vmem_limit_bytes=vmem_limit,
            ),
        )(x, scale_s)

    # ---------------- tiled two-pass path ----------------
    assert S % ts == 0 and (ts == S or ts % 8 == 0), (
        f"block_rows={ts} must divide S={S} and be a multiple of 8")
    n_ts = S // ts

    # Pass 1: per-batch sum of squares -> 1/rms (f32), accumulated over S tiles.
    stats = pl.pallas_call(
        functools.partial(_rms_reduce_kernel, inv_n=inv_n),
        out_shape=jax.ShapeDtypeStruct((B, 8, 128), jnp.float32),
        grid_spec=pltpu.PrefetchScalarGridSpec(
            num_scalar_prefetch=0,
            grid=(B, n_ts),
            in_specs=[pl.BlockSpec((1, ts, D), lambda b, s: (b, s, 0))],
            out_specs=pl.BlockSpec((1, 8, 128), lambda b, s: (b, 0, 0)),
        ),
        compiler_params=pltpu.CompilerParams(
            dimension_semantics=("parallel", "arbitrary"),
        ),
    )(x)

    # Pass 2: stream S tiles, normalize and scale (all tiles independent).
    return pl.pallas_call(
        _rms_normalize_kernel,
        out_shape=jax.ShapeDtypeStruct((B, S, D), x.dtype),
        grid_spec=pltpu.PrefetchScalarGridSpec(
            num_scalar_prefetch=0,
            grid=(B, n_ts),
            in_specs=[
                pl.BlockSpec((1, 8, 128), lambda b, s: (b, 0, 0)),
                pl.BlockSpec((1, ts, D), lambda b, s: (b, s, 0)),
                pl.BlockSpec((ts, D), lambda b, s: (s, 0)),
            ],
            out_specs=pl.BlockSpec((1, ts, D), lambda b, s: (b, s, 0)),
        ),
        compiler_params=pltpu.CompilerParams(
            dimension_semantics=("parallel", "parallel"),
        ),
    )(stats, x, scale_s)


# ---------------------------------------------------------------------------
# Reference & test
# ---------------------------------------------------------------------------

def rmsnorm_ref(x, scale):
    B, S, D = x.shape
    xf = x.astype(jnp.float32)
    rms = jnp.sqrt(jnp.sum(xf * xf, axis=(1, 2))) * float(S * D) ** -0.5
    raw = xf / rms[:, None, None]
    return (scale[:S, :].astype(jnp.float32)[None, :, :] * raw).astype(x.dtype)


if __name__ == "__main__":
    # Small but lane-dense shapes (D = 128 -> unmasked, dense stores).
    B, S, D = 2, 16, 128
    key = jax.random.PRNGKey(0)
    kx, ks = jax.random.split(key)
    x = jax.random.normal(kx, (B, S, D), dtype=jnp.float32)
    # Module initializes scale to ones; perturb deterministically so the
    # elementwise scale path is actually exercised.
    scale = 1.0 + 0.1 * jax.random.normal(ks, (S, D), dtype=jnp.float32)

    out_fused = rmsnorm(x, scale)                # auto: fused single-pass path
    out_tiled = rmsnorm(x, scale, block_rows=8)  # force the tiled two-pass path
    jax.block_until_ready((out_fused, out_tiled))

    ref = rmsnorm_ref(x, scale)
    # rtol covers hardware rsqrt / reduction-order differences in f32 math.
    assert jnp.allclose(out_fused, ref, rtol=1e-3, atol=1e-6), "fused path mismatch"
    assert jnp.allclose(out_tiled, ref, rtol=1e-3, atol=1e-6), "tiled path mismatch"
    print("KERNEL_OK")
</pallas_src>

<mosaic_0001>
module attributes {stable_mosaic.version = 11 : i64} {
  func.func @_rms_fused_kernel(%arg0: i32, %arg1: memref<1x16x128xf32, #tpu.memory_space<vmem>>, %arg2: memref<16x128xf32, #tpu.memory_space<vmem>>, %arg3: memref<1x16x128xf32, #tpu.memory_space<vmem>>) attributes {dimension_semantics = [#tpu.dimension_semantics<parallel>], iteration_bounds = array<i64: 2>, scalar_prefetch = 0 : i64, scratch_operands = 0 : i64, tpu.core_type = #tpu.core_type<tc>, window_params = [{transform_indices = @transform_0, window_bounds = array<i64: 1, 16, 128>}, {pipeline_mode = #tpu.pipeline_mode<synchronous>, transform_indices = @transform_1, window_bounds = array<i64: 16, 128>}, {transform_indices = @transform_2, window_bounds = array<i64: 1, 16, 128>}]} {
    %c0 = arith.constant 0 : index
    %c0_0 = arith.constant 0 : index
    %c0_1 = arith.constant 0 : index
    %0 = vector.load %arg1[%c0, %c0_0, %c0_1] : memref<1x16x128xf32, #tpu.memory_space<vmem>>, vector<1x16x128xf32>
    %1 = arith.mulf %0, %0 : vector<1x16x128xf32>
    %2 = vector.shape_cast %1 : vector<1x16x128xf32> to vector<1x1x16x128xf32>
    %cst = arith.constant dense<0.000000e+00> : vector<1xf32>
    %3 = vector.multi_reduction <add>, %2, %cst [1, 2, 3] : vector<1x1x16x128xf32> to vector<1xf32>
    %4 = vector.shape_cast %3 : vector<1xf32> to vector<1x1x1x1xf32>
    %5 = vector.extract %4[0, 0, 0, 0] : f32 from vector<1x1x1x1xf32>
    %cst_2 = arith.constant 4.8828125E-4 : f32
    %6 = arith.mulf %5, %cst_2 : f32
    %7 = math.rsqrt %6 : f32
    %c0_3 = arith.constant 0 : index
    %c0_4 = arith.constant 0 : index
    %c0_5 = arith.constant 0 : index
    %8 = vector.load %arg1[%c0_3, %c0_4, %c0_5] : memref<1x16x128xf32, #tpu.memory_space<vmem>>, vector<1x16x128xf32>
    %c0_6 = arith.constant 0 : index
    %c0_7 = arith.constant 0 : index
    %9 = vector.load %arg2[%c0_6, %c0_7] : memref<16x128xf32, #tpu.memory_space<vmem>>, vector<16x128xf32>
    %10 = vector.shape_cast %9 : vector<16x128xf32> to vector<1x16x128xf32>
    %11 = arith.mulf %8, %10 : vector<1x16x128xf32>
    %12 = vector.broadcast %7 : f32 to vector<1x16x128xf32>
    %13 = arith.mulf %11, %12 : vector<1x16x128xf32>
    %c0_8 = arith.constant 0 : index
    %c0_9 = arith.constant 0 : index
    %c0_10 = arith.constant 0 : index
    %14 = vector.load %arg3[%c0_8, %c0_9, %c0_10] : memref<1x16x128xf32, #tpu.memory_space<vmem>>, vector<1x16x128xf32>
    tpu.vector_store %arg3[%c0_8, %c0_9, %c0_10], %13 {strides = array<i32>} : memref<1x16x128xf32, #tpu.memory_space<vmem>>, vector<1x16x128xf32>,
    return
  }
  func.func @transform_0(%arg0: i32) -> (i32, i32, i32) {
    %c0_i32 = arith.constant 0 : i32
    %c0_i32_0 = arith.constant 0 : i32
    %c0_i32_1 = arith.constant 0 : i32
    return %arg0, %c0_i32, %c0_i32_0 : i32, i32, i32
  }
  func.func @transform_1(%arg0: i32) -> (i32, i32) {
    %c0_i32 = arith.constant 0 : i32
    %c0_i32_0 = arith.constant 0 : i32
    %c0_i32_1 = arith.constant 0 : i32
    return %c0_i32, %c0_i32_0 : i32, i32
  }
  func.func @transform_2(%arg0: i32) -> (i32, i32, i32) {
    %c0_i32 = arith.constant 0 : i32
    %c0_i32_0 = arith.constant 0 : i32
    %c0_i32_1 = arith.constant 0 : i32
    return %arg0, %c0_i32, %c0_i32_0 : i32, i32, i32
  }
}

</mosaic_0001>

<llo_original>
// kernel: tpu_custom_call.1
$region0: #{tpu_custom_call.1}
  #allocation0 [shape = 'u32[]', space=smem, size = 0x4, offset = 0x4, fixed_abs, tag = 'smem constant byte address 0x4 - core index']
  #allocation1 [shape = 'u32[72,128]{1,0:T(1,128)}', space=vmem, size = 0x9000, scoped, tag = 'internal scratch']
  %s0 = inlined_call_operand.hbm [shape: f32[2,16,128], index: 0, kind: input, shape index: {}]
  %s1 = inlined_call_operand.hbm [shape: f32[16,128], index: 1, kind: input, shape index: {}]
  %s2 = inlined_call_operand.hbm [shape: f32[2,16,128], index: 2, kind: output, shape index: {}]
  %s3 = sld [smem:[#allocation0]]
  $region49: #{tpu_custom_call.1} parent=0
    _
  %s5 = ssub.s32 1, %s3
  %s6 = scalar_select 0, %s5, %s3
  $region1: #{tpu_custom_call.1} parent=0
    #allocation2 [shape = 'u8[16384]{0}', space=vmem, size = 0x4000, scoped, tag = 'input window, operand 0']
    #allocation3 [shape = 's32[2]{0}', space=sflag, size = 0x8, scoped, tag = 'scoped memory for tpu_custom_call.1']
    #allocation4 [shape = 's32[2]{0}', space=sflag, size = 0x8, scoped, tag = 'scoped memory for tpu_custom_call.1']
    #allocation5 [shape = 'u8[8192]{0}', space=vmem, size = 0x2000, scoped, tag = 'input window, operand 1, single buffered']
    #allocation6 [shape = 's32[1]{0}', space=sflag, size = 0x4, scoped, tag = 'scoped memory for tpu_custom_call.1']
    #allocation7 [shape = 'u8[16384]{0}', space=vmem, size = 0x4000, scoped, tag = 'output window, operand 0']
    %7 = vsyncpa [#allocation3], 0
    %s8 = scalar_lea.sflag [#allocation3], 1
    %9 = vsyncpa %s8, 0
    %10 = vsyncpa [#allocation6], 0
    %11 = vsyncpa [#allocation4], 0
    %s12 = scalar_lea.sflag [#allocation4], 1
    %13 = vsyncpa %s12, 0
    loop: start=0, step=1, limit=4
    $region2: #{tpu_custom_call.1} parent=1 // loop_pre_header
      _
    $region3: #{tpu_custom_call.1} parent=1 // loop_header
      %s15 = sphi 0, %s19
      %p16 = scmp.ge.s32.totalorder %s15, 4
      %s25 = sphi 0, %s27
      %s28 = sphi 0, %s25
      %s29 = sphi 0, %s28
      %s45 = sphi 0, %s29
      %s49 = sphi 0, %s49
      %s51 = sphi 0, %s49
      %s52 = sphi 0, %s51
      %s66 = sphi 0, %s52
      %s72 = sphi 0, %s74
      %s75 = sphi 0, %s72
      %s76 = sphi 0, %s75
      %s92 = sphi 0, %s76
    $region4: #{tpu_custom_call.1} parent=1 // loop_header_branch
      %18 = sbr.rel (%p16) target = $region8
    $region5: #{tpu_custom_call.1} parent=1 // loop_body
      %s20 = ssub.s32 %s15, 1
      %s21 = ssub.s32 %s15, 2
      %s22 = sadd.s32 %s15, 1
      %s23 = ssub.s32 %s15, %s22
      %p24 = scmp.eq.s32.totalorder %s23, 0
      %s26 = sadd.s32 %s25, 1
      %s27 = scalar_select %p24, %s25, %s26
      %p30 = pneg %p24
      %p31 = scmp.eq.s32.totalorder %s15, 1
      %p32 = por %p30, %p31
      %p33 = scmp.ne.s32.totalorder %s25, %s28
      %p34 = scmp.eq.s32.totalorder %s15, 0
      %p35 = por %p33, %p34
      %p36 = scmp.ne.s32.totalorder %s25, %s28
      %p37 = scmp.eq.s32.totalorder %s20, 1
      %p38 = por %p36, %p37
      %p39 = scmp.ne.s32.totalorder %s28, %s29
      %p40 = scmp.eq.s32.totalorder %s20, 0
      %p41 = por %p39, %p40
      %p42 = scmp.ne.s32.totalorder %s28, %s29
      %p43 = scmp.eq.s32.totalorder %s21, 1
      %p44 = por %p42, %p43
      %p46 = scmp.ne.s32.totalorder %s29, %s45
      %p47 = scmp.eq.s32.totalorder %s21, 0
      %p48 = por %p46, %p47
      %s50 = sadd.s32 %s49, 1
      %p53 = scmp.eq.s32.totalorder %s15, 1
      %p54 = scmp.ne.s32.totalorder %s49, %s51
      %p55 = scmp.eq.s32.totalorder %s15, 0
      %p56 = por %p54, %p55
      %p57 = scmp.ne.s32.totalorder %s49, %s51
      %p58 = scmp.eq.s32.totalorder %s20, 1
      %p59 = por %p57, %p58
      %p60 = scmp.ne.s32.totalorder %s51, %s52
      %p61 = scmp.eq.s32.totalorder %s20, 0
      %p62 = por %p60, %p61
      %p63 = scmp.ne.s32.totalorder %s51, %s52
      %p64 = scmp.eq.s32.totalorder %s21, 1
      %p65 = por %p63, %p64
      %p67 = scmp.ne.s32.totalorder %s52, %s66
      %p68 = scmp.eq.s32.totalorder %s21, 0
      %p69 = por %p67, %p68
      %s70 = ssub.s32 %s15, %s22
      %p71 = scmp.eq.s32.totalorder %s70, 0
      %s73 = sadd.s32 %s72, 1
      %s74 = scalar_select %p71, %s72, %s73
      %p77 = pneg %p71
      %p78 = scmp.eq.s32.totalorder %s15, 1
      %p79 = por %p77, %p78
      %p80 = scmp.ne.s32.totalorder %s72, %s75
      %p81 = scmp.eq.s32.totalorder %s15, 0
      %p82 = por %p80, %p81
      %p83 = scmp.ne.s32.totalorder %s72, %s75
      %p84 = scmp.eq.s32.totalorder %s20, 1
      %p85 = por %p83, %p84
      %p86 = scmp.ne.s32.totalorder %s75, %s76
      %p87 = scmp.eq.s32.totalorder %s20, 0
      %p88 = por %p86, %p87
      %p89 = scmp.ne.s32.totalorder %s75, %s76
      %p90 = scmp.eq.s32.totalorder %s21, 1
      %p91 = por %p89, %p90
      %p93 = scmp.ne.s32.totalorder %s76, %s92
      %p94 = scmp.eq.s32.totalorder %s21, 0
      %p95 = por %p93, %p94
      %p96 = scmp.le.s32.totalorder 1, %s15
      %p97 = scmp.lt.s32.totalorder %s15, 3
      %p98 = pnand %p96, %p97
      %p99 = pneg %p98
      // Predicated region
      $region9: #{tpu_custom_call.1} parent=5 // pred_check
        _
      $region10: #{tpu_custom_call.1} parent=5 // pred_check_branch
        %101 = sbr.rel (%p98) target = $region12
      $region11: #{tpu_custom_call.1} parent=5 // pred_region
        %s102 = ssub.s32 %s15, 1
        // Predicated region
        $region13: #{tpu_custom_call.1} parent=11 // pred_check
          %p103 = pneg %p62
        $region14: #{tpu_custom_call.1} parent=11 // pred_check_branch
          %105 = sbr.rel (%p103) target = $region16
        $region15: #{tpu_custom_call.1} parent=11 // pred_region
          %107 = vsyncadd [#allocation6], 0
          %s108 = sshll.u32 %s1, 4
          %s109 = int_to_ptr.hbm [resolvable:$true] %s108
          %s110 = sshll.u32 [#allocation5], 4
          %s111 = int_to_ptr.vmem [resolvable:$true] %s110
          %116 = dma.hbm_to_vmem [thread:$0]  %s109, 256, %s111, [#allocation6], 128, 128, 8
        $region16: #{tpu_custom_call.1} parent=11 // pred_fallthru
          _
      $region12: #{tpu_custom_call.1} parent=5 // pred_fallthru
        _
      %p117 = scmp.lt.s32.totalorder %s15, 2
      // Predicated region
      $region17: #{tpu_custom_call.1} parent=5 // pred_check
        %p118 = pneg %p117
      $region18: #{tpu_custom_call.1} parent=5 // pred_check_branch
        %120 = sbr.rel (%p118) target = $region20
      $region19: #{tpu_custom_call.1} parent=5 // pred_region
        // Predicated region
        $region21: #{tpu_custom_call.1} parent=19 // pred_check
          %p121 = pneg %p35
        $region22: #{tpu_custom_call.1} parent=19 // pred_check_branch
          %123 = sbr.rel (%p121) target = $region24
        $region23: #{tpu_custom_call.1} parent=19 // pred_region
          %s124 = sand.u32 %s25, 1
          %s125 = scalar_lea.sflag [#allocation3], %s124
          %s126 = sand.u32 %s25, 1
          %s127 = smul.addr %s126, 16
          %s128 = scalar_lea.vmem [#allocation2], %s127
          %130 = vsyncadd %s125, 0
          %s131 = smul.addr %s15, 2
          %s132 = smul.addr %s131, 8
          %s133 = scalar_lea.hbm %s0, %s132
          %s134 = sshll.u32 %s133, 4
          %s135 = int_to_ptr.hbm [resolvable:$true] %s134
          %s136 = sshll.u32 %s128, 4
          %s137 = int_to_ptr.vmem [resolvable:$true] %s136
          %142 = dma.hbm_to_vmem [thread:$0]  %s135, 256, %s137, %s125, 128, 128, 8
        $region24: #{tpu_custom_call.1} parent=19 // pred_fallthru
          _
      $region20: #{tpu_custom_call.1} parent=5 // pred_fallthru
        _
      %p143 = scmp.le.s32.totalorder 1, %s15
      %p144 = scmp.lt.s32.totalorder %s15, 3
      %p145 = pnand %p143, %p144
      %p146 = pneg %p145
      // Predicated region
      $region25: #{tpu_custom_call.1} parent=5 // pred_check
        _
      $region26: #{tpu_custom_call.1} parent=5 // pred_check_branch
        %148 = sbr.rel (%p145) target = $region28
      $region27: #{tpu_custom_call.1} parent=5 // pred_region
        %s149 = ssub.s32 %s15, 1
        %s150 = sand.u32 %s28, 1
        %s151 = scalar_lea.sflag [#allocation3], %s150
        %s152 = sand.u32 %s28, 1
        %s153 = smul.addr %s152, 16
        %s154 = scalar_lea.vmem [#allocation2], %s153
        // Predicated region
        $region29: #{tpu_custom_call.1} parent=27 // pred_check
          %p155 = pneg %p41
        $region30: #{tpu_custom_call.1} parent=27 // pred_check_branch
          %157 = sbr.rel (%p155) target = $region32
        $region31: #{tpu_custom_call.1} parent=27 // pred_region
          %159 = dma.done %s151, 256
        $region32: #{tpu_custom_call.1} parent=27 // pred_fallthru
          _
        // Predicated region
        $region33: #{tpu_custom_call.1} parent=27 // pred_check
          %p160 = pneg %p62
        $region34: #{tpu_custom_call.1} parent=27 // pred_check_branch
          %162 = sbr.rel (%p160) target = $region36
        $region35: #{tpu_custom_call.1} parent=27 // pred_region
          %164 = dma.done [#allocation6], 256
        $region36: #{tpu_custom_call.1} parent=27 // pred_fallthru
          _
        %s165 = sand.u32 %s28, 1
        %s166 = scalar_lea.sflag [#allocation3], %s165
        %s167 = sand.u32 %s28, 1
        %s168 = smul.addr %s167, 16
        %s169 = scalar_lea.vmem [#allocation2], %s168
        %p170 = pneg %p41
        %p171 = pneg %p38
        %p172 = pneg %p62
        %p173 = pneg %p59
        %p174 = pneg %p88
        %p175 = pneg %p85
        %s176 = sand.u32 %s75, 1
        %s177 = scalar_lea.sflag [#allocation4], %s176
        %s178 = sand.u32 %s75, 1
        %s179 = smul.addr %s178, 16
        %s180 = scalar_lea.vmem [#allocation7], %s179
        %v181 = vld [vmem:[%s154] sm:$0xff]
        %v182 = vld [vmem:[%s154 + $0x8] sm:$0xff]
        %v183 = vmul.f32 %v181, %v181
        %v184 = vmul.f32 %v182, %v182
        %v185 = vadd.f32 %v183, %v184
        %186 = vadd.xlane.f32.xlu0 %v185
        %v187 = vpop.xlane.xlu0 %186
        %v188 = vrot.slane %v187, 4
        %v189 = vadd.f32 %v187, %v188
        %v190 = vrot.slane %v189, 2
        %v191 = vadd.f32 %v189, %v190
        %v192 = vrot.slane %v191, 1
        %v193 = vadd.f32 %v191, %v192
        %s194 = vtos %v193
        %s195 = smul.f32 %s194, 0.00048828125
        %v196 = vstv %s195
        %v197 = vrsqrt.pop %v196
        %v198 = vmul.f32 %v197, %v196
        %v199 = vmul.f32 %v198, %v197
        %v200 = vmul.f32 0.5, %v199
        %v201 = vsub.f32 1.5, %v200
        %v202 = vmul.f32 %v197, %v201
        %vm203 = vweird.f32 %v196
        %vm204 = vweird.f32 %v197
        %vm205 = vmor %vm203, %vm204
        %v206 = vsel %vm205, %v197, %v202
        %s207 = vtos %v206
        %v208 = vld [vmem:[#allocation5] sm:$0xff]
        %v209 = vld [vmem:[#allocation5 + $0x8] sm:$0xff]
        %v210 = vmul.f32 %v181, %v208
        %v211 = vmul.f32 %v182, %v209
        %v212 = vstv %s207
        %v213 = vmul.f32 %v210, %v212
        %v214 = vmul.f32 %v211, %v212
        %215 = vst [vmem:[%s180] sm:$0xff] %v213
        %216 = vst [vmem:[%s180 + $0x8] sm:$0xff] %v214
        %s217 = sand.u32 %s75, 1
        %s218 = scalar_lea.sflag [#allocation4], %s217
        %s219 = sand.u32 %s75, 1
        %s220 = smul.addr %s219, 16
        %s221 = scalar_lea.vmem [#allocation7], %s220
        // Predicated region
        $region37: #{tpu_custom_call.1} parent=27 // pred_check
          %p222 = pneg %p85
        $region38: #{tpu_custom_call.1} parent=27 // pred_check_branch
          %224 = sbr.rel (%p222) target = $region40
        $region39: #{tpu_custom_call.1} parent=27 // pred_region
          %226 = vsyncadd %s218, 0
          %s227 = smul.addr %s20, 2
          %s228 = smul.addr %s227, 8
          %s229 = scalar_lea.hbm %s2, %s228
          %s230 = sshll.u32 %s221, 4
          %s231 = int_to_ptr.vmem [resolvable:$true] %s230
          %s232 = sshll.u32 %s229, 4
          %s233 = int_to_ptr.hbm [resolvable:$true] %s232
          %238 = dma.vmem_to_hbm [thread:$0]  %s231, 256, %s233, %s218, 128, 128, 8
        $region40: #{tpu_custom_call.1} parent=27 // pred_fallthru
          _
      $region28: #{tpu_custom_call.1} parent=5 // pred_fallthru
        _
      %p239 = scmp.le.s32.totalorder 2, %s15
      // Predicated region
      $region41: #{tpu_custom_call.1} parent=5 // pred_check
        %p240 = pneg %p239
      $region42: #{tpu_custom_call.1} parent=5 // pred_check_branch
        %242 = sbr.rel (%p240) target = $region44
      $region43: #{tpu_custom_call.1} parent=5 // pred_region
        %s243 = ssub.s32 %s15, 2
        // Predicated region
        $region45: #{tpu_custom_call.1} parent=43 // pred_check
          %p244 = pneg %p91
        $region46: #{tpu_custom_call.1} parent=43 // pred_check_branch
          %246 = sbr.rel (%p244) target = $region48
        $region47: #{tpu_custom_call.1} parent=43 // pred_region
          %s247 = sand.u32 %s76, 1
          %s248 = scalar_lea.sflag [#allocation4], %s247
          %s249 = sand.u32 %s76, 1
          %s250 = smul.addr %s249, 16
          %s251 = scalar_lea.vmem [#allocation7], %s250
          %253 = dma.done %s248, 256
        $region48: #{tpu_custom_call.1} parent=43 // pred_fallthru
          _
      $region44: #{tpu_custom_call.1} parent=5 // pred_fallthru
        _
    $region6: #{tpu_custom_call.1} parent=1 // loop_footer
      %s19 = sadd.s32 1, %s15
    $region7: #{tpu_custom_call.1} parent=1 // loop_footer_branch
      %14 = sbr.rel target = $region3
    $region8: #{tpu_custom_call.1} parent=1 // loop_exit
      _
    %254 = vsyncpa [#allocation3], 1
    %s255 = scalar_lea.sflag [#allocation3], 1
    %256 = vsyncpa %s255, 1
    %257 = vsyncpa [#allocation6], 1
    %258 = vsyncpa [#allocation4], 1
    %s259 = scalar_lea.sflag [#allocation4], 1
    %260 = vsyncpa %s259, 1

</llo_original>
